<compile_context>
chip_gen: v7x
topology: tpu7x:2x2x1
jax: 0.10.0
libtpu: 0.0.40
codegen_flags: <defaults>
</compile_context>

<pallas_src>
import jax
import jax.numpy as jnp
from jax.experimental import pallas as pl
from jax.experimental.pallas import tpu as pltpu


def _conv_mm_kernel(p_ref, w_ref, b_ref, s_ref, o_ref):
    # p_ref: (TM, Kp) patches, w_ref: (TN, Kp) weights, b/s_ref: (1, TN).
    acc = jax.lax.dot_general(
        p_ref[...], w_ref[...],
        dimension_numbers=(((1,), (1,)), ((), ())),
        preferred_element_type=jnp.float32)              # (TM, TN)
    o_ref[...] = ((acc + b_ref[...]) * s_ref[...]).astype(o_ref.dtype)


def _round_up(x, m):
    return ((x + m - 1) // m) * m


def conv2d_decomp_scaled_pruned(
        x, v, g, bias, scale, *, stride=1, padding=0, dilation=1,
        decomp_type="norm", threshold_rate=0.1, eps=1e-6,
        tile_m=512, tile_n=128, compute_dtype=jnp.float32):
    """x: (N, Cin, H, W). v: (Cout, Cin, kh, kw). g: (Cout, Cin).
    bias, scale: (Cout,). Returns (N, Cout, Hout, Wout) float32."""
    N, Cin, H, W = x.shape
    Cout, Cin_w, kh, kw = v.shape
    assert Cin_w == Cin  # TODO(synk): groups != 1 is not supported here.

    f32 = jnp.float32

    # ---- weight construction (hoisted, one-off; no per-tile recompute) ------
    w = v.astype(f32) * g.astype(f32)[:, :, None, None]   # (Cout, Cin, kh, kw)
    if decomp_type != "norm":
        w = w / jnp.sqrt(jnp.float32(kh))

    # ---- scale pruning (tiny global reduction, hoisted) ----------------------
    scale = scale.astype(f32)
    active = (scale > eps).astype(f32)
    scale_a = scale * active
    mean_active = jnp.sum(scale_a) / jnp.sum(active)
    mask = (scale_a > mean_active * threshold_rate).astype(f32)
    scale_pruned = scale_a * mask
    # TODO(synk): the PyTorch in-place update self.scale.data.mul_(scale_mask)
    # is a training-time parameter side effect with no functional equivalent
    # here; it does not change this forward output.

    # ---- output geometry ------------------------------------------------------
    Hout = (H + 2 * padding - dilation * (kh - 1) - 1) // stride + 1
    Wout = (W + 2 * padding - dilation * (kw - 1) - 1) // stride + 1
    M = N * Hout * Wout
    K = kh * kw * Cin

    # ---- im2col in channels-last layout (no big (M, K) transpose) ------------
    x_nhwc = jnp.transpose(x.astype(f32), (0, 2, 3, 1))            # (N, H, W, Cin)
    xp = jnp.pad(x_nhwc,
                 ((0, 0), (padding, padding), (padding, padding), (0, 0)))
    cols = []
    for dy in range(kh):
        for dx in range(kw):
            oy, ox = dy * dilation, dx * dilation
            cols.append(xp[:, oy:oy + stride * Hout:stride,
                              ox:ox + stride * Wout:stride, :])
    patches = jnp.stack(cols, axis=3)              # (N, Hout, Wout, kh*kw, Cin)
    patches = patches.reshape(M, K)                # K ordered (kh, kw, Cin)
    # TODO(synk): for bandwidth-bound shapes, fuse patch extraction into the
    # kernel (overlapping H-row windows) to avoid the kh*kw HBM inflation.

    # weight flattened with the matching K order (kh, kw, Cin)
    w_flat = jnp.transpose(w, (0, 2, 3, 1)).reshape(Cout, K)

    # ---- pad to lane/sublane-friendly tile sizes ------------------------------
    Kp = _round_up(K, 128)                          # contraction dim lane-dense
    TN = tile_n if Cout > tile_n else _round_up(Cout, 128)
    TN = max(TN, 128)                               # lane-dense output stores
    Cp = _round_up(Cout, TN)
    TM = _round_up(min(tile_m, _round_up(M, 8)), 8)
    Mp = _round_up(M, TM)

    patches = jnp.pad(patches, ((0, Mp - M), (0, Kp - K))).astype(compute_dtype)
    w_flat = jnp.pad(w_flat, ((0, Cp - Cout), (0, Kp - K))).astype(compute_dtype)
    b2 = jnp.pad(bias.astype(f32), (0, Cp - Cout)).reshape(1, Cp)
    s2 = jnp.pad(scale_pruned, (0, Cp - Cout)).reshape(1, Cp)

    # ---- VMEM budget (double-buffered tiles; keep under v7x 64 MiB) ----------
    bpe = jnp.dtype(compute_dtype).itemsize
    tile_bytes = 2 * (TM * Kp * bpe + TN * Kp * bpe + 2 * TN * 4 + TM * TN * 4)
    vmem_limit = int(min(max(tile_bytes + (4 << 20), 16 << 20), 56 << 20))

    # Cout-tile axis is innermost so the (TM, Kp) patches tile is reused across
    # all Cout tiles without re-DMA; both axes are independent -> 'parallel'.
    grid = (Mp // TM, Cp // TN)
    out_flat = pl.pallas_call(
        _conv_mm_kernel,
        out_shape=jax.ShapeDtypeStruct((Mp, Cp), f32),
        grid_spec=pltpu.PrefetchScalarGridSpec(
            num_scalar_prefetch=0,
            grid=grid,
            in_specs=[
                pl.BlockSpec((TM, Kp), lambda i, j: (i, 0)),   # patches tile
                pl.BlockSpec((TN, Kp), lambda i, j: (j, 0)),   # weight tile
                pl.BlockSpec((1, TN), lambda i, j: (0, j)),    # bias
                pl.BlockSpec((1, TN), lambda i, j: (0, j)),    # pruned scale
            ],
            out_specs=pl.BlockSpec((TM, TN), lambda i, j: (i, j)),
        ),
        compiler_params=pltpu.CompilerParams(
            dimension_semantics=("parallel", "parallel"),
            vmem_limit_bytes=vmem_limit),
    )(patches, w_flat, b2, s2)

    out = out_flat[:M, :Cout].reshape(N, Hout, Wout, Cout)
    return jnp.transpose(out, (0, 3, 1, 2))


def _reference(x, v, g, bias, scale, *, stride, padding,
               threshold_rate=0.1, eps=1e-6):
    # Pure-JAX reference matching the PyTorch forward.
    w = v * g[:, :, None, None]
    out = jax.lax.conv_general_dilated(
        x, w, window_strides=(stride, stride),
        padding=[(padding, padding), (padding, padding)],
        dimension_numbers=("NCHW", "OIHW", "NCHW"))
    out = out + bias[None, :, None, None]
    active = (scale > eps).astype(jnp.float32)
    scale_a = scale * active
    mean_active = jnp.sum(scale_a) / jnp.sum(active)
    mask = (scale_a > mean_active * threshold_rate).astype(jnp.float32)
    return out * (scale_a * mask)[None, :, None, None]


if __name__ == "__main__":
    # Module config (args=None -> decomp_type='norm', oblique g init,
    # threshold_rate = default_threshold_rate = 0.1, eps = 1e-6).
    N, Cin, Cout, H, W = 2, 4, 8, 16, 16
    k, stride, padding = 3, 1, 1
    threshold_rate, eps = 0.1, 1e-6

    key = jax.random.PRNGKey(0)
    kg, kv, kx, ks = jax.random.split(key, 4)

    # g ~ normal, row-normalized (dim=1)
    g = jax.random.normal(kg, (Cout, Cin), dtype=jnp.float32)
    g = g / jnp.linalg.norm(g, axis=1, keepdims=True)
    # v ~ normal, normalized over spatial dims (2,3)
    v = jax.random.normal(kv, (Cout, Cin, k, k), dtype=jnp.float32)
    v = v / jnp.sqrt(jnp.sum(v * v, axis=(2, 3), keepdims=True))
    # bias initialized to 0.0
    bias = jnp.zeros((Cout,), dtype=jnp.float32)
    # scale init is ones; perturb a couple of channels so both pruning masks
    # (epsilon mask and threshold mask) are exercised.
    scale = jnp.ones((Cout,), dtype=jnp.float32)
    scale = scale.at[1].set(0.0)     # inactive (<= eps)
    scale = scale.at[3].set(0.05)    # active but below mean * threshold_rate
    scale = scale + 0.1 * jnp.abs(jax.random.normal(ks, (Cout,))) * (scale > 0.5)

    x = jax.random.normal(kx, (N, Cin, H, W), dtype=jnp.float32)

    out = conv2d_decomp_scaled_pruned(
        x, v, g, bias, scale, stride=stride, padding=padding,
        threshold_rate=threshold_rate, eps=eps)
    out = jax.block_until_ready(out)

    ref = _reference(x, v, g, bias, scale, stride=stride, padding=padding,
                     threshold_rate=threshold_rate, eps=eps)
    assert out.shape == ref.shape == (N, Cout, H, W), (out.shape, ref.shape)
    max_err = float(jnp.max(jnp.abs(out - ref)))
    assert jnp.allclose(out, ref, atol=1e-3, rtol=1e-3), max_err

    print("KERNEL_OK")
</pallas_src>

<mosaic_0001>
module attributes {stable_mosaic.version = 11 : i64} {
  func.func @_conv_mm_kernel(%arg0: i32, %arg1: i32, %arg2: memref<512x128xf32, #tpu.memory_space<vmem>>, %arg3: memref<128x128xf32, #tpu.memory_space<vmem>>, %arg4: memref<1x128xf32, #tpu.memory_space<vmem>>, %arg5: memref<1x128xf32, #tpu.memory_space<vmem>>, %arg6: memref<512x128xf32, #tpu.memory_space<vmem>>) attributes {dimension_semantics = [#tpu.dimension_semantics<parallel>, #tpu.dimension_semantics<parallel>], iteration_bounds = array<i64: 1, 1>, scalar_prefetch = 0 : i64, scratch_operands = 0 : i64, tpu.core_type = #tpu.core_type<tc>, window_params = [{transform_indices = @transform_0, window_bounds = array<i64: 512, 128>}, {transform_indices = @transform_1, window_bounds = array<i64: 128, 128>}, {transform_indices = @transform_2, window_bounds = array<i64: 1, 128>}, {transform_indices = @transform_3, window_bounds = array<i64: 1, 128>}, {transform_indices = @transform_4, window_bounds = array<i64: 512, 128>}]} {
    %c0 = arith.constant 0 : index
    %c0_0 = arith.constant 0 : index
    %0 = vector.load %arg2[%c0, %c0_0] : memref<512x128xf32, #tpu.memory_space<vmem>>, vector<512x128xf32>
    %c0_1 = arith.constant 0 : index
    %c0_2 = arith.constant 0 : index
    %1 = vector.load %arg3[%c0_1, %c0_2] : memref<128x128xf32, #tpu.memory_space<vmem>>, vector<128x128xf32>
    %cst = arith.constant dense<0.000000e+00> : vector<512x128xf32>
    %2 = tpu.matmul %0, %1, %cst {dimension_numbers = #tpu.dot_dimension_numbers<[1], [1], [0], [0], [0, 0, 1, 0], [], []>} : vector<512x128xf32>, vector<128x128xf32>, vector<512x128xf32> -> vector<512x128xf32>
    %c0_3 = arith.constant 0 : index
    %c0_4 = arith.constant 0 : index
    %3 = vector.load %arg4[%c0_3, %c0_4] : memref<1x128xf32, #tpu.memory_space<vmem>>, vector<1x128xf32>
    %4 = vector.broadcast %3 : vector<1x128xf32> to vector<512x128xf32>
    %5 = arith.addf %2, %4 : vector<512x128xf32>
    %c0_5 = arith.constant 0 : index
    %c0_6 = arith.constant 0 : index
    %6 = vector.load %arg5[%c0_5, %c0_6] : memref<1x128xf32, #tpu.memory_space<vmem>>, vector<1x128xf32>
    %7 = vector.broadcast %6 : vector<1x128xf32> to vector<512x128xf32>
    %8 = arith.mulf %5, %7 : vector<512x128xf32>
    %c0_7 = arith.constant 0 : index
    %c0_8 = arith.constant 0 : index
    %9 = vector.load %arg6[%c0_7, %c0_8] : memref<512x128xf32, #tpu.memory_space<vmem>>, vector<512x128xf32>
    tpu.vector_store %arg6[%c0_7, %c0_8], %8 {strides = array<i32>} : memref<512x128xf32, #tpu.memory_space<vmem>>, vector<512x128xf32>,
    return
  }
  func.func @transform_0(%arg0: i32, %arg1: i32) -> (i32, i32) {
    %c0_i32 = arith.constant 0 : i32
    %c0_i32_0 = arith.constant 0 : i32
    return %arg0, %c0_i32 : i32, i32
  }
  func.func @transform_1(%arg0: i32, %arg1: i32) -> (i32, i32) {
    %c0_i32 = arith.constant 0 : i32
    %c0_i32_0 = arith.constant 0 : i32
    return %arg1, %c0_i32 : i32, i32
  }
  func.func @transform_2(%arg0: i32, %arg1: i32) -> (i32, i32) {
    %c0_i32 = arith.constant 0 : i32
    %c0_i32_0 = arith.constant 0 : i32
    return %c0_i32, %arg1 : i32, i32
  }
  func.func @transform_3(%arg0: i32, %arg1: i32) -> (i32, i32) {
    %c0_i32 = arith.constant 0 : i32
    %c0_i32_0 = arith.constant 0 : i32
    return %c0_i32, %arg1 : i32, i32
  }
  func.func @transform_4(%arg0: i32, %arg1: i32) -> (i32, i32) {
    %c0_i32 = arith.constant 0 : i32
    return %arg0, %arg1 : i32, i32
  }
}

</mosaic_0001>

<llo_original>
// kernel: tpu_custom_call.1
$region0: #{tpu_custom_call.1}
  #allocation0 [shape = 'u32[]', space=smem, size = 0x4, offset = 0x4, fixed_abs, tag = 'smem constant byte address 0x4 - core index']
  #allocation1 [shape = 'u32[144,128]{1,0:T(1,128)}', space=vmem, size = 0x12000, scoped, tag = 'internal scratch']
  %s0 = inlined_call_operand.hbm [shape: f32[512,128], index: 0, kind: input, shape index: {}]
  %s1 = inlined_call_operand.hbm [shape: f32[128,128], index: 1, kind: input, shape index: {}]
  %s2 = inlined_call_operand.vmem [shape: f32[1,128], index: 2, kind: input, shape index: {}]
  %s3 = inlined_call_operand.vmem [shape: f32[1,128], index: 3, kind: input, shape index: {}]
  %s4 = inlined_call_operand.hbm [shape: f32[512,128], index: 4, kind: output, shape index: {}]
  %s5 = sld [smem:[#allocation0]]
  $region34: #{tpu_custom_call.1} parent=0
    _
  %s7 = ssub.s32 1, %s5
  %s8 = scalar_select 0, %s7, %s5
  $region1: #{tpu_custom_call.1} parent=0
    #allocation2 [shape = 'u8[262144]{0}', space=vmem, size = 0x40000, scoped, tag = 'input window, operand 0, single buffered']
    #allocation3 [shape = 's32[1]{0}', space=sflag, size = 0x4, scoped, tag = 'scoped memory for tpu_custom_call.1']
    #allocation4 [shape = 's32[1]{0}', space=sflag, size = 0x4, scoped, tag = 'scoped memory for tpu_custom_call.1']
    #allocation5 [shape = 'u8[65536]{0}', space=vmem, size = 0x10000, scoped, tag = 'input window, operand 1, single buffered']
    #allocation6 [shape = 's32[1]{0}', space=sflag, size = 0x4, scoped, tag = 'scoped memory for tpu_custom_call.1']
    #allocation7 [shape = 'u8[262144]{0}', space=vmem, size = 0x40000, scoped, tag = 'output window, operand 0, single buffered']
    %9 = vsyncpa [#allocation3], 0
    %10 = vsyncpa [#allocation6], 0
    %11 = vsyncpa [#allocation4], 0
    // Predicated region
    $region2: #{tpu_custom_call.1} parent=1 // pred_check
      _
    $region3: #{tpu_custom_call.1} parent=1 // pred_check_branch
      %13 = sbr.rel (0) target = $region5
    $region4: #{tpu_custom_call.1} parent=1 // pred_region
      %s15 = ssub.s32 8192, 8192
      %16 = vsyncadd [#allocation3], %s15
      %s17 = sshll.u32 [#allocation2], 4
      %s18 = int_to_ptr.vmem [resolvable:$true] %s17
      %23 = dma.hbm_to_vmem [thread:$0]  %s0, 8192, %s18, [#allocation3], 128, 128, 8
    $region5: #{tpu_custom_call.1} parent=1 // pred_fallthru
      _
    // Predicated region
    $region6: #{tpu_custom_call.1} parent=1 // pred_check
      _
    $region7: #{tpu_custom_call.1} parent=1 // pred_check_branch
      %25 = sbr.rel (0) target = $region9
    $region8: #{tpu_custom_call.1} parent=1 // pred_region
      %s27 = ssub.s32 2048, 2048
      %28 = vsyncadd [#allocation6], %s27
      %s29 = sshll.u32 [#allocation5], 4
      %s30 = int_to_ptr.vmem [resolvable:$true] %s29
      %35 = dma.hbm_to_vmem [thread:$0]  %s1, 2048, %s30, [#allocation6], 128, 128, 8
    $region9: #{tpu_custom_call.1} parent=1 // pred_fallthru
      _
    // Predicated region
    $region10: #{tpu_custom_call.1} parent=1 // pred_check
      _
    $region11: #{tpu_custom_call.1} parent=1 // pred_check_branch
      %37 = sbr.rel (0) target = $region13
    $region12: #{tpu_custom_call.1} parent=1 // pred_region
      _
    $region13: #{tpu_custom_call.1} parent=1 // pred_fallthru
      _
    // Predicated region
    $region14: #{tpu_custom_call.1} parent=1 // pred_check
      _
    $region15: #{tpu_custom_call.1} parent=1 // pred_check_branch
      %39 = sbr.rel (0) target = $region17
    $region16: #{tpu_custom_call.1} parent=1 // pred_region
      _
    $region17: #{tpu_custom_call.1} parent=1 // pred_fallthru
      _
    // Predicated region
    $region18: #{tpu_custom_call.1} parent=1 // pred_check
      _
    $region19: #{tpu_custom_call.1} parent=1 // pred_check_branch
      %41 = sbr.rel (0) target = $region21
    $region20: #{tpu_custom_call.1} parent=1 // pred_region
      %42 = dma.done [#allocation3], 8192
    $region21: #{tpu_custom_call.1} parent=1 // pred_fallthru
      _
    // Predicated region
    $region22: #{tpu_custom_call.1} parent=1 // pred_check
      _
    $region23: #{tpu_custom_call.1} parent=1 // pred_check_branch
      %44 = sbr.rel (0) target = $region25
    $region24: #{tpu_custom_call.1} parent=1 // pred_region
      %45 = dma.done [#allocation6], 2048
    $region25: #{tpu_custom_call.1} parent=1 // pred_fallthru
      _
    %v46 = vld [vmem:[#allocation2] sm:$0xff]
    %v47 = vld [vmem:[#allocation2 + $0x8] sm:$0xff]
    %v48 = vld [vmem:[#allocation2 + $0x10] sm:$0xff]
    %v49 = vld [vmem:[#allocation2 + $0x18] sm:$0xff]
    %v50 = vld [vmem:[#allocation2 + $0x20] sm:$0xff]
    %v51 = vld [vmem:[#allocation2 + $0x28] sm:$0xff]
    %v52 = vld [vmem:[#allocation2 + $0x30] sm:$0xff]
    %v53 = vld [vmem:[#allocation2 + $0x38] sm:$0xff]
    %v54 = vld [vmem:[#allocation2 + $0x40] sm:$0xff]
    %v55 = vld [vmem:[#allocation2 + $0x48] sm:$0xff]
    %v56 = vld [vmem:[#allocation2 + $0x50] sm:$0xff]
    %v57 = vld [vmem:[#allocation2 + $0x58] sm:$0xff]
    %v58 = vld [vmem:[#allocation2 + $0x60] sm:$0xff]
    %v59 = vld [vmem:[#allocation2 + $0x68] sm:$0xff]
    %v60 = vld [vmem:[#allocation2 + $0x70] sm:$0xff]
    %v61 = vld [vmem:[#allocation2 + $0x78] sm:$0xff]
    %v62 = vld [vmem:[#allocation2 + $0x80] sm:$0xff]
    %v63 = vld [vmem:[#allocation2 + $0x88] sm:$0xff]
    %v64 = vld [vmem:[#allocation2 + $0x90] sm:$0xff]
    %v65 = vld [vmem:[#allocation2 + $0x98] sm:$0xff]
    %v66 = vld [vmem:[#allocation2 + $0xa0] sm:$0xff]
    %v67 = vld [vmem:[#allocation2 + $0xa8] sm:$0xff]
    %v68 = vld [vmem:[#allocation2 + $0xb0] sm:$0xff]
    %v69 = vld [vmem:[#allocation2 + $0xb8] sm:$0xff]
    %v70 = vld [vmem:[#allocation2 + $0xc0] sm:$0xff]
    %v71 = vld [vmem:[#allocation2 + $0xc8] sm:$0xff]
    %v72 = vld [vmem:[#allocation2 + $0xd0] sm:$0xff]
    %v73 = vld [vmem:[#allocation2 + $0xd8] sm:$0xff]
    %v74 = vld [vmem:[#allocation2 + $0xe0] sm:$0xff]
    %v75 = vld [vmem:[#allocation2 + $0xe8] sm:$0xff]
    %v76 = vld [vmem:[#allocation2 + $0xf0] sm:$0xff]
    %v77 = vld [vmem:[#allocation2 + $0xf8] sm:$0xff]
    %v78 = vld [vmem:[#allocation2 + $0x100] sm:$0xff]
    %v79 = vld [vmem:[#allocation2 + $0x108] sm:$0xff]
    %v80 = vld [vmem:[#allocation2 + $0x110] sm:$0xff]
    %v81 = vld [vmem:[#allocation2 + $0x118] sm:$0xff]
    %v82 = vld [vmem:[#allocation2 + $0x120] sm:$0xff]
    %v83 = vld [vmem:[#allocation2 + $0x128] sm:$0xff]
    %v84 = vld [vmem:[#allocation2 + $0x130] sm:$0xff]
    %v85 = vld [vmem:[#allocation2 + $0x138] sm:$0xff]
    %v86 = vld [vmem:[#allocation2 + $0x140] sm:$0xff]
    %v87 = vld [vmem:[#allocation2 + $0x148] sm:$0xff]
    %v88 = vld [vmem:[#allocation2 + $0x150] sm:$0xff]
    %v89 = vld [vmem:[#allocation2 + $0x158] sm:$0xff]
    %v90 = vld [vmem:[#allocation2 + $0x160] sm:$0xff]
    %v91 = vld [vmem:[#allocation2 + $0x168] sm:$0xff]
    %v92 = vld [vmem:[#allocation2 + $0x170] sm:$0xff]
    %v93 = vld [vmem:[#allocation2 + $0x178] sm:$0xff]
    %v94 = vld [vmem:[#allocation2 + $0x180] sm:$0xff]
    %v95 = vld [vmem:[#allocation2 + $0x188] sm:$0xff]
    %v96 = vld [vmem:[#allocation2 + $0x190] sm:$0xff]
    %v97 = vld [vmem:[#allocation2 + $0x198] sm:$0xff]
    %v98 = vld [vmem:[#allocation2 + $0x1a0] sm:$0xff]
    %v99 = vld [vmem:[#allocation2 + $0x1a8] sm:$0xff]
    %v100 = vld [vmem:[#allocation2 + $0x1b0] sm:$0xff]
    %v101 = vld [vmem:[#allocation2 + $0x1b8] sm:$0xff]
    %v102 = vld [vmem:[#allocation2 + $0x1c0] sm:$0xff]
    %v103 = vld [vmem:[#allocation2 + $0x1c8] sm:$0xff]
    %v104 = vld [vmem:[#allocation2 + $0x1d0] sm:$0xff]
    %v105 = vld [vmem:[#allocation2 + $0x1d8] sm:$0xff]
    %v106 = vld [vmem:[#allocation2 + $0x1e0] sm:$0xff]
    %v107 = vld [vmem:[#allocation2 + $0x1e8] sm:$0xff]
    %v108 = vld [vmem:[#allocation2 + $0x1f0] sm:$0xff]
    %v109 = vld [vmem:[#allocation2 + $0x1f8] sm:$0xff]
    %v110 = vld [vmem:[#allocation5] sm:$0xff]
    %v111 = vld [vmem:[#allocation5 + $0x8] sm:$0xff]
    %v112 = vld [vmem:[#allocation5 + $0x10] sm:$0xff]
    %v113 = vld [vmem:[#allocation5 + $0x18] sm:$0xff]
    %v114 = vld [vmem:[#allocation5 + $0x20] sm:$0xff]
    %v115 = vld [vmem:[#allocation5 + $0x28] sm:$0xff]
    %v116 = vld [vmem:[#allocation5 + $0x30] sm:$0xff]
    %v117 = vld [vmem:[#allocation5 + $0x38] sm:$0xff]
    %v118 = vld [vmem:[#allocation5 + $0x40] sm:$0xff]
    %v119 = vld [vmem:[#allocation5 + $0x48] sm:$0xff]
    %v120 = vld [vmem:[#allocation5 + $0x50] sm:$0xff]
    %v121 = vld [vmem:[#allocation5 + $0x58] sm:$0xff]
    %v122 = vld [vmem:[#allocation5 + $0x60] sm:$0xff]
    %v123 = vld [vmem:[#allocation5 + $0x68] sm:$0xff]
    %v124 = vld [vmem:[#allocation5 + $0x70] sm:$0xff]
    %v125 = vld [vmem:[#allocation5 + $0x78] sm:$0xff]
    %v126 = vld [vmem:[%s2] sm:$0x1]
    %v128 = vlaneseq
    %v129 = vshrl.u32 %v128, 7
    %v130 = vsub.s32 0, %v129
    %v131 = vrot.slane %v126, %v130
    %133 = vmatprep.subr.mxu0 0.0
    %134 = vmatpush1.xpose.msra.mxu0 %v110
    %135 = vmatprep.subr.mxu0 0.0
    %136 = vmatpush1.xpose.msra.mxu0 %v111
    %137 = vmatprep.subr.mxu0 0.0
    %138 = vmatpush1.xpose.msra.mxu0 %v112
    %139 = vmatprep.subr.mxu0 0.0
    %140 = vmatpush1.xpose.msra.mxu0 %v113
    %141 = vmatprep.subr.mxu0 0.0
    %142 = vmatpush1.xpose.msra.mxu0 %v114
    %143 = vmatprep.subr.mxu0 0.0
    %144 = vmatpush1.xpose.msra.mxu0 %v115
    %145 = vmatprep.subr.mxu0 0.0
    %146 = vmatpush1.xpose.msra.mxu0 %v116
    %147 = vmatprep.subr.mxu0 0.0
    %148 = vmatpush1.xpose.msra.mxu0 %v117
    %149 = vmatprep.subr.mxu0 0.0
    %150 = vmatpush1.xpose.msra.mxu0 %v118
    %151 = vmatprep.subr.mxu0 0.0
    %152 = vmatpush1.xpose.msra.mxu0 %v119
    %153 = vmatprep.subr.mxu0 0.0
    %154 = vmatpush1.xpose.msra.mxu0 %v120
    %155 = vmatprep.subr.mxu0 0.0
    %156 = vmatpush1.xpose.msra.mxu0 %v121
    %157 = vmatprep.subr.mxu0 0.0
    %158 = vmatpush1.xpose.msra.mxu0 %v122
    %159 = vmatprep.subr.mxu0 0.0
    %160 = vmatpush1.xpose.msra.mxu0 %v123
    %161 = vmatprep.subr.mxu0 0.0
    %162 = vmatpush1.xpose.msra.mxu0 %v124
    %163 = vmatprep.subr.mxu0 0.0
    %164 = vmatpush1.xpose.msra.mxu0 %v125
    %165 = vmatprep.subr.mxu0 0.0
    %166 = vmatpush1.xpose.msra.mxu0 0.0
    %167 = vmatprep.subr.mxu0 0.0
    %168 = vmatpush1.xpose.msra.mxu0 0.0
    %169 = vmatprep.subr.mxu0 0.0
    %170 = vmatpush1.xpose.msra.mxu0 0.0
    %171 = vmatprep.subr.mxu0 0.0
    %172 = vmatpush1.xpose.msra.mxu0 0.0
    %173 = vmatprep.subr.mxu0 0.0
    %174 = vmatpush1.xpose.msra.mxu0 0.0
    %175 = vmatprep.subr.mxu0 0.0
    %176 = vmatpush1.xpose.msra.mxu0 0.0
    %177 = vmatprep.subr.mxu0 0.0
    %178 = vmatpush1.xpose.msra.mxu0 0.0
    %179 = vmatprep.subr.mxu0 0.0
    %180 = vmatpush1.xpose.msra.mxu0 0.0
    %181 = vmatprep.subr.mxu0 0.0
    %182 = vmatpush1.xpose.msra.mxu0 0.0
    %183 = vmatprep.subr.mxu0 0.0
    %184 = vmatpush1.xpose.msra.mxu0 0.0
    %185 = vmatprep.subr.mxu0 0.0
    %186 = vmatpush1.xpose.msra.mxu0 0.0
    %187 = vmatprep.subr.mxu0 0.0
    %188 = vmatpush1.xpose.msra.mxu0 0.0
    %189 = vmatprep.subr.mxu0 0.0
    %190 = vmatpush1.xpose.msra.mxu0 0.0
    %191 = vmatprep.subr.mxu0 0.0
    %192 = vmatpush1.xpose.msra.mxu0 0.0
    %193 = vmatprep.subr.mxu0 0.0
    %194 = vmatpush1.xpose.msra.mxu0 0.0
    %195 = vmatprep.subr.mxu0 0.0
    %196 = vmatpush1.xpose.msra.mxu0 0.0
    %197 = vmatprep.mubr.f32.mxu0 0.0
    %198 = vmatmul.mubr.f32.gmra.mrb[0].mxu0 %v46
    %v199 = vpop.f32.mrb[0].mxu0
    %v200 = vadd.f32 %v131, %v199
    %v201 = vpop.f32.mrb[0].mxu0
    %202 = vmatprep.mubr.f32.mxu0 0.0
    %203 = vmatmul.mubr.f32.gmra.mrb[0].mxu0 %v47
    %v204 = vpop.f32.mrb[0].mxu0
    %v205 = vadd.f32 %v131, %v204
    %v206 = vpop.f32.mrb[0].mxu0
    %207 = vmatprep.mubr.f32.mxu0 0.0
    %208 = vmatmul.mubr.f32.gmra.mrb[0].mxu0 %v48
    %v209 = vpop.f32.mrb[0].mxu0
    %v210 = vadd.f32 %v131, %v209
    %v211 = vpop.f32.mrb[0].mxu0
    %212 = vmatprep.mubr.f32.mxu0 0.0
    %213 = vmatmul.mubr.f32.gmra.mrb[0].mxu0 %v49
    %v214 = vpop.f32.mrb[0].mxu0
    %v215 = vadd.f32 %v131, %v214
    %v216 = vpop.f32.mrb[0].mxu0
    %217 = vmatprep.mubr.f32.mxu0 0.0
    %218 = vmatmul.mubr.f32.gmra.mrb[0].mxu0 %v50
    %v219 = vpop.f32.mrb[0].mxu0
    %v220 = vadd.f32 %v131, %v219
    %v221 = vpop.f32.mrb[0].mxu0
    %222 = vmatprep.mubr.f32.mxu0 0.0
    %223 = vmatmul.mubr.f32.gmra.mrb[0].mxu0 %v51
    %v224 = vpop.f32.mrb[0].mxu0
    %v225 = vadd.f32 %v131, %v224
    %v226 = vpop.f32.mrb[0].mxu0
    %227 = vmatprep.mubr.f32.mxu0 0.0
    %228 = vmatmul.mubr.f32.gmra.mrb[0].mxu0 %v52
    %v229 = vpop.f32.mrb[0].mxu0
    %v230 = vadd.f32 %v131, %v229
    %v231 = vpop.f32.mrb[0].mxu0
    %232 = vmatprep.mubr.f32.mxu0 0.0
    %233 = vmatmul.mubr.f32.gmra.mrb[0].mxu0 %v53
    %v234 = vpop.f32.mrb[0].mxu0
    %v235 = vadd.f32 %v131, %v234
    %v236 = vpop.f32.mrb[0].mxu0
    %237 = vmatprep.mubr.f32.mxu0 0.0
    %238 = vmatmul.mubr.f32.gmra.mrb[0].mxu0 %v54
    %v239 = vpop.f32.mrb[0].mxu0
    %v240 = vadd.f32 %v131, %v239
    %v241 = vpop.f32.mrb[0].mxu0
    %242 = vmatprep.mubr.f32.mxu0 0.0
    %243 = vmatmul.mubr.f32.gmra.mrb[0].mxu0 %v55
    %v244 = vpop.f32.mrb[0].mxu0
    %v245 = vadd.f32 %v131, %v244
    %v246 = vpop.f32.mrb[0].mxu0
    %247 = vmatprep.mubr.f32.mxu0 0.0
    %248 = vmatmul.mubr.f32.gmra.mrb[0].mxu0 %v56
    %v249 = vpop.f32.mrb[0].mxu0
    %v250 = vadd.f32 %v131, %v249
    %v251 = vpop.f32.mrb[0].mxu0
    %252 = vmatprep.mubr.f32.mxu0 0.0
    %253 = vmatmul.mubr.f32.gmra.mrb[0].mxu0 %v57
    %v254 = vpop.f32.mrb[0].mxu0
    %v255 = vadd.f32 %v131, %v254
    %v256 = vpop.f32.mrb[0].mxu0
    %257 = vmatprep.mubr.f32.mxu0 0.0
    %258 = vmatmul.mubr.f32.gmra.mrb[0].mxu0 %v58
    %v259 = vpop.f32.mrb[0].mxu0
    %v260 = vadd.f32 %v131, %v259
    %v261 = vpop.f32.mrb[0].mxu0
    %262 = vmatprep.mubr.f32.mxu0 0.0
    %263 = vmatmul.mubr.f32.gmra.mrb[0].mxu0 %v59
    %v264 = vpop.f32.mrb[0].mxu0
    %v265 = vadd.f32 %v131, %v264
    %v266 = vpop.f32.mrb[0].mxu0
    %267 = vmatprep.mubr.f32.mxu0 0.0
    %268 = vmatmul.mubr.f32.gmra.mrb[0].mxu0 %v60
    %v269 = vpop.f32.mrb[0].mxu0
    %v270 = vadd.f32 %v131, %v269
    %v271 = vpop.f32.mrb[0].mxu0
    %272 = vmatprep.mubr.f32.mxu0 0.0
    %273 = vmatmul.mubr.f32.gmra.mrb[0].mxu0 %v61
    %v274 = vpop.f32.mrb[0].mxu0
    %v275 = vadd.f32 %v131, %v274
    %v276 = vpop.f32.mrb[0].mxu0
    %277 = vmatprep.mubr.f32.mxu0 0.0
    %278 = vmatmul.mubr.f32.gmra.mrb[0].mxu0 %v62
    %v279 = vpop.f32.mrb[0].mxu0
    %v280 = vadd.f32 %v131, %v279
    %v281 = vpop.f32.mrb[0].mxu0
    %282 = vmatprep.mubr.f32.mxu0 0.0
    %283 = vmatmul.mubr.f32.gmra.mrb[0].mxu0 %v63
    %v284 = vpop.f32.mrb[0].mxu0
    %v285 = vadd.f32 %v131, %v284
    %v286 = vpop.f32.mrb[0].mxu0
    %287 = vmatprep.mubr.f32.mxu0 0.0
    %288 = vmatmul.mubr.f32.gmra.mrb[0].mxu0 %v64
    %v289 = vpop.f32.mrb[0].mxu0
    %v290 = vadd.f32 %v131, %v289
    %v291 = vpop.f32.mrb[0].mxu0
    %292 = vmatprep.mubr.f32.mxu0 0.0
    %293 = vmatmul.mubr.f32.gmra.mrb[0].mxu0 %v65
    %v294 = vpop.f32.mrb[0].mxu0
    %v295 = vadd.f32 %v131, %v294
    %v296 = vpop.f32.mrb[0].mxu0
    %297 = vmatprep.mubr.f32.mxu0 0.0
    %298 = vmatmul.mubr.f32.gmra.mrb[0].mxu0 %v66
    %v299 = vpop.f32.mrb[0].mxu0
    %v300 = vadd.f32 %v131, %v299
    %v301 = vpop.f32.mrb[0].mxu0
    %302 = vmatprep.mubr.f32.mxu0 0.0
    %303 = vmatmul.mubr.f32.gmra.mrb[0].mxu0 %v67
    %v304 = vpop.f32.mrb[0].mxu0
    %v305 = vadd.f32 %v131, %v304
    %v306 = vpop.f32.mrb[0].mxu0
    %307 = vmatprep.mubr.f32.mxu0 0.0
    %308 = vmatmul.mubr.f32.gmra.mrb[0].mxu0 %v68
    %v309 = vpop.f32.mrb[0].mxu0
    %v310 = vadd.f32 %v131, %v309
    %v311 = vpop.f32.mrb[0].mxu0
    %312 = vmatprep.mubr.f32.mxu0 0.0
    %313 = vmatmul.mubr.f32.gmra.mrb[0].mxu0 %v69
    %v314 = vpop.f32.mrb[0].mxu0
    %v315 = vadd.f32 %v131, %v314
    %v316 = vpop.f32.mrb[0].mxu0
    %317 = vmatprep.mubr.f32.mxu0 0.0
    %318 = vmatmul.mubr.f32.gmra.mrb[0].mxu0 %v70
    %v319 = vpop.f32.mrb[0].mxu0
    %v320 = vadd.f32 %v131, %v319
    %v321 = vpop.f32.mrb[0].mxu0
    %322 = vmatprep.mubr.f32.mxu0 0.0
    %323 = vmatmul.mubr.f32.gmra.mrb[0].mxu0 %v71
    %v324 = vpop.f32.mrb[0].mxu0
    %v325 = vadd.f32 %v131, %v324
    %v326 = vpop.f32.mrb[0].mxu0
    %327 = vmatprep.mubr.f32.mxu0 0.0
    %328 = vmatmul.mubr.f32.gmra.mrb[0].mxu0 %v72
    %v329 = vpop.f32.mrb[0].mxu0
    %v330 = vadd.f32 %v131, %v329
    %v331 = vpop.f32.mrb[0].mxu0
    %332 = vmatprep.mubr.f32.mxu0 0.0
    %333 = vmatmul.mubr.f32.gmra.mrb[0].mxu0 %v73
    %v334 = vpop.f32.mrb[0].mxu0
    %v335 = vadd.f32 %v131, %v334
    %v336 = vpop.f32.mrb[0].mxu0
    %337 = vmatprep.mubr.f32.mxu0 0.0
    %338 = vmatmul.mubr.f32.gmra.mrb[0].mxu0 %v74
    %v339 = vpop.f32.mrb[0].mxu0
    %v340 = vadd.f32 %v131, %v339
    %v341 = vpop.f32.mrb[0].mxu0
    %342 = vmatprep.mubr.f32.mxu0 0.0
    %343 = vmatmul.mubr.f32.gmra.mrb[0].mxu0 %v75
    %v344 = vpop.f32.mrb[0].mxu0
    %v345 = vadd.f32 %v131, %v344
    %v346 = vpop.f32.mrb[0].mxu0
    %347 = vmatprep.mubr.f32.mxu0 0.0
    %348 = vmatmul.mubr.f32.gmra.mrb[0].mxu0 %v76
    %v349 = vpop.f32.mrb[0].mxu0
    %v350 = vadd.f32 %v131, %v349
    %v351 = vpop.f32.mrb[0].mxu0
    %352 = vmatprep.mubr.f32.mxu0 0.0
    %353 = vmatmul.mubr.f32.gmra.mrb[0].mxu0 %v77
    %v354 = vpop.f32.mrb[0].mxu0
    %v355 = vadd.f32 %v131, %v354
    %v356 = vpop.f32.mrb[0].mxu0
    %357 = vmatprep.mubr.f32.mxu0 0.0
    %358 = vmatmul.mubr.f32.gmra.mrb[0].mxu0 %v78
    %v359 = vpop.f32.mrb[0].mxu0
    %v360 = vadd.f32 %v131, %v359
    %v361 = vpop.f32.mrb[0].mxu0
    %362 = vmatprep.mubr.f32.mxu0 0.0
    %363 = vmatmul.mubr.f32.gmra.mrb[0].mxu0 %v79
    %v364 = vpop.f32.mrb[0].mxu0
    %v365 = vadd.f32 %v131, %v364
    %v366 = vpop.f32.mrb[0].mxu0
    %367 = vmatprep.mubr.f32.mxu0 0.0
    %368 = vmatmul.mubr.f32.gmra.mrb[0].mxu0 %v80
    %v369 = vpop.f32.mrb[0].mxu0
    %v370 = vadd.f32 %v131, %v369
    %v371 = vpop.f32.mrb[0].mxu0
    %372 = vmatprep.mubr.f32.mxu0 0.0
    %373 = vmatmul.mubr.f32.gmra.mrb[0].mxu0 %v81
    %v374 = vpop.f32.mrb[0].mxu0
    %v375 = vadd.f32 %v131, %v374
    %v376 = vpop.f32.mrb[0].mxu0
    %377 = vmatprep.mubr.f32.mxu0 0.0
    %378 = vmatmul.mubr.f32.gmra.mrb[0].mxu0 %v82
    %v379 = vpop.f32.mrb[0].mxu0
    %v380 = vadd.f32 %v131, %v379
    %v381 = vpop.f32.mrb[0].mxu0
    %382 = vmatprep.mubr.f32.mxu0 0.0
    %383 = vmatmul.mubr.f32.gmra.mrb[0].mxu0 %v83
    %v384 = vpop.f32.mrb[0].mxu0
    %v385 = vadd.f32 %v131, %v384
    %v386 = vpop.f32.mrb[0].mxu0
    %387 = vmatprep.mubr.f32.mxu0 0.0
    %388 = vmatmul.mubr.f32.gmra.mrb[0].mxu0 %v84
    %v389 = vpop.f32.mrb[0].mxu0
    %v390 = vadd.f32 %v131, %v389
    %v391 = vpop.f32.mrb[0].mxu0
    %392 = vmatprep.mubr.f32.mxu0 0.0
    %393 = vmatmul.mubr.f32.gmra.mrb[0].mxu0 %v85
    %v394 = vpop.f32.mrb[0].mxu0
    %v395 = vadd.f32 %v131, %v394
    %v396 = vpop.f32.mrb[0].mxu0
    %397 = vmatprep.mubr.f32.mxu0 0.0
    %398 = vmatmul.mubr.f32.gmra.mrb[0].mxu0 %v86
    %v399 = vpop.f32.mrb[0].mxu0
    %v400 = vadd.f32 %v131, %v399
    %v401 = vpop.f32.mrb[0].mxu0
    %402 = vmatprep.mubr.f32.mxu0 0.0
    %403 = vmatmul.mubr.f32.gmra.mrb[0].mxu0 %v87
    %v404 = vpop.f32.mrb[0].mxu0
    %v405 = vadd.f32 %v131, %v404
    %v406 = vpop.f32.mrb[0].mxu0
    %407 = vmatprep.mubr.f32.mxu0 0.0
    %408 = vmatmul.mubr.f32.gmra.mrb[0].mxu0 %v88
    %v409 = vpop.f32.mrb[0].mxu0
    %v410 = vadd.f32 %v131, %v409
    %v411 = vpop.f32.mrb[0].mxu0
    %412 = vmatprep.mubr.f32.mxu0 0.0
    %413 = vmatmul.mubr.f32.gmra.mrb[0].mxu0 %v89
    %v414 = vpop.f32.mrb[0].mxu0
    %v415 = vadd.f32 %v131, %v414
    %v416 = vpop.f32.mrb[0].mxu0
    %417 = vmatprep.mubr.f32.mxu0 0.0
    %418 = vmatmul.mubr.f32.gmra.mrb[0].mxu0 %v90
    %v419 = vpop.f32.mrb[0].mxu0
    %v420 = vadd.f32 %v131, %v419
    %v421 = vpop.f32.mrb[0].mxu0
    %422 = vmatprep.mubr.f32.mxu0 0.0
    %423 = vmatmul.mubr.f32.gmra.mrb[0].mxu0 %v91
    %v424 = vpop.f32.mrb[0].mxu0
    %v425 = vadd.f32 %v131, %v424
    %v426 = vpop.f32.mrb[0].mxu0
    %427 = vmatprep.mubr.f32.mxu0 0.0
    %428 = vmatmul.mubr.f32.gmra.mrb[0].mxu0 %v92
    %v429 = vpop.f32.mrb[0].mxu0
    %v430 = vadd.f32 %v131, %v429
    %v431 = vpop.f32.mrb[0].mxu0
    %432 = vmatprep.mubr.f32.mxu0 0.0
    %433 = vmatmul.mubr.f32.gmra.mrb[0].mxu0 %v93
    %v434 = vpop.f32.mrb[0].mxu0
    %v435 = vadd.f32 %v131, %v434
    %v436 = vpop.f32.mrb[0].mxu0
    %437 = vmatprep.mubr.f32.mxu0 0.0
    %438 = vmatmul.mubr.f32.gmra.mrb[0].mxu0 %v94
    %v439 = vpop.f32.mrb[0].mxu0
    %v440 = vadd.f32 %v131, %v439
    %v441 = vpop.f32.mrb[0].mxu0
    %442 = vmatprep.mubr.f32.mxu0 0.0
    %443 = vmatmul.mubr.f32.gmra.mrb[0].mxu0 %v95
    %v444 = vpop.f32.mrb[0].mxu0
    %v445 = vadd.f32 %v131, %v444
    %v446 = vpop.f32.mrb[0].mxu0
    %447 = vmatprep.mubr.f32.mxu0 0.0
    %448 = vmatmul.mubr.f32.gmra.mrb[0].mxu0 %v96
    %v449 = vpop.f32.mrb[0].mxu0
    %v450 = vadd.f32 %v131, %v449
    %v451 = vpop.f32.mrb[0].mxu0
    %452 = vmatprep.mubr.f32.mxu0 0.0
    %453 = vmatmul.mubr.f32.gmra.mrb[0].mxu0 %v97
    %v454 = vpop.f32.mrb[0].mxu0
    %v455 = vadd.f32 %v131, %v454
    %v456 = vpop.f32.mrb[0].mxu0
    %457 = vmatprep.mubr.f32.mxu0 0.0
    %458 = vmatmul.mubr.f32.gmra.mrb[0].mxu0 %v98
    %v459 = vpop.f32.mrb[0].mxu0
    %v460 = vadd.f32 %v131, %v459
    %v461 = vpop.f32.mrb[0].mxu0
    %462 = vmatprep.mubr.f32.mxu0 0.0
    %463 = vmatmul.mubr.f32.gmra.mrb[0].mxu0 %v99
    %v464 = vpop.f32.mrb[0].mxu0
    %v465 = vadd.f32 %v131, %v464
    %v466 = vpop.f32.mrb[0].mxu0
    %467 = vmatprep.mubr.f32.mxu0 0.0
    %468 = vmatmul.mubr.f32.gmra.mrb[0].mxu0 %v100
    %v469 = vpop.f32.mrb[0].mxu0
    %v470 = vadd.f32 %v131, %v469
    %v471 = vpop.f32.mrb[0].mxu0
    %472 = vmatprep.mubr.f32.mxu0 0.0
    %473 = vmatmul.mubr.f32.gmra.mrb[0].mxu0 %v101
    %v474 = vpop.f32.mrb[0].mxu0
    %v475 = vadd.f32 %v131, %v474
    %v476 = vpop.f32.mrb[0].mxu0
    %477 = vmatprep.mubr.f32.mxu0 0.0
    %478 = vmatmul.mubr.f32.gmra.mrb[0].mxu0 %v102
    %v479 = vpop.f32.mrb[0].mxu0
    %v480 = vadd.f32 %v131, %v479
    %v481 = vpop.f32.mrb[0].mxu0
    %482 = vmatprep.mubr.f32.mxu0 0.0
    %483 = vmatmul.mubr.f32.gmra.mrb[0].mxu0 %v103
    %v484 = vpop.f32.mrb[0].mxu0
    %v485 = vadd.f32 %v131, %v484
    %v486 = vpop.f32.mrb[0].mxu0
    %487 = vmatprep.mubr.f32.mxu0 0.0
    %488 = vmatmul.mubr.f32.gmra.mrb[0].mxu0 %v104
    %v489 = vpop.f32.mrb[0].mxu0
    %v490 = vadd.f32 %v131, %v489
    %v491 = vpop.f32.mrb[0].mxu0
    %492 = vmatprep.mubr.f32.mxu0 0.0
    %493 = vmatmul.mubr.f32.gmra.mrb[0].mxu0 %v105
    %v494 = vpop.f32.mrb[0].mxu0
    %v495 = vadd.f32 %v131, %v494
    %v496 = vpop.f32.mrb[0].mxu0
    %497 = vmatprep.mubr.f32.mxu0 0.0
    %498 = vmatmul.mubr.f32.gmra.mrb[0].mxu0 %v106
    %v499 = vpop.f32.mrb[0].mxu0
    %v500 = vadd.f32 %v131, %v499
    %v501 = vpop.f32.mrb[0].mxu0
    %502 = vmatprep.mubr.f32.mxu0 0.0
    %503 = vmatmul.mubr.f32.gmra.mrb[0].mxu0 %v107
    %v504 = vpop.f32.mrb[0].mxu0
    %v505 = vadd.f32 %v131, %v504
    %v506 = vpop.f32.mrb[0].mxu0
    %507 = vmatprep.mubr.f32.mxu0 0.0
    %508 = vmatmul.mubr.f32.gmra.mrb[0].mxu0 %v108
    %v509 = vpop.f32.mrb[0].mxu0
    %v510 = vadd.f32 %v131, %v509
    %v511 = vpop.f32.mrb[0].mxu0
    %512 = vmatprep.mubr.f32.mxu0 0.0
    %513 = vmatmul.mubr.f32.gmra.mrb[0].mxu0 %v109
    %v514 = vpop.f32.mrb[0].mxu0
    %v515 = vadd.f32 %v131, %v514
    %v516 = vpop.f32.mrb[0].mxu0
    %517 = vdwg.mxu0
    %v518 = vld [vmem:[%s3] sm:$0x1]
    %v520 = vlaneseq
    %v521 = vshrl.u32 %v520, 7
    %v522 = vsub.s32 0, %v521
    %v523 = vrot.slane %v518, %v522
    %v525 = vmul.f32 %v200, %v523
    %v526 = vmul.f32 %v205, %v523
    %v527 = vmul.f32 %v210, %v523
    %v528 = vmul.f32 %v215, %v523
    %v529 = vmul.f32 %v220, %v523
    %v530 = vmul.f32 %v225, %v523
    %v531 = vmul.f32 %v230, %v523
    %v532 = vmul.f32 %v235, %v523
    %v533 = vmul.f32 %v240, %v523
    %v534 = vmul.f32 %v245, %v523
    %v535 = vmul.f32 %v250, %v523
    %v536 = vmul.f32 %v255, %v523
    %v537 = vmul.f32 %v260, %v523
    %v538 = vmul.f32 %v265, %v523
    %v539 = vmul.f32 %v270, %v523
    %v540 = vmul.f32 %v275, %v523
    %v541 = vmul.f32 %v280, %v523
    %v542 = vmul.f32 %v285, %v523
    %v543 = vmul.f32 %v290, %v523
    %v544 = vmul.f32 %v295, %v523
    %v545 = vmul.f32 %v300, %v523
    %v546 = vmul.f32 %v305, %v523
    %v547 = vmul.f32 %v310, %v523
    %v548 = vmul.f32 %v315, %v523
    %v549 = vmul.f32 %v320, %v523
    %v550 = vmul.f32 %v325, %v523
    %v551 = vmul.f32 %v330, %v523
    %v552 = vmul.f32 %v335, %v523
    %v553 = vmul.f32 %v340, %v523
    %v554 = vmul.f32 %v345, %v523
    %v555 = vmul.f32 %v350, %v523
    %v556 = vmul.f32 %v355, %v523
    %v557 = vmul.f32 %v360, %v523
    %v558 = vmul.f32 %v365, %v523
    %v559 = vmul.f32 %v370, %v523
    %v560 = vmul.f32 %v375, %v523
    %v561 = vmul.f32 %v380, %v523
    %v562 = vmul.f32 %v385, %v523
    %v563 = vmul.f32 %v390, %v523
    %v564 = vmul.f32 %v395, %v523
    %v565 = vmul.f32 %v400, %v523
    %v566 = vmul.f32 %v405, %v523
    %v567 = vmul.f32 %v410, %v523
    %v568 = vmul.f32 %v415, %v523
    %v569 = vmul.f32 %v420, %v523
    %v570 = vmul.f32 %v425, %v523
    %v571 = vmul.f32 %v430, %v523
    %v572 = vmul.f32 %v435, %v523
    %v573 = vmul.f32 %v440, %v523
    %v574 = vmul.f32 %v445, %v523
    %v575 = vmul.f32 %v450, %v523
    %v576 = vmul.f32 %v455, %v523
    %v577 = vmul.f32 %v460, %v523
    %v578 = vmul.f32 %v465, %v523
    %v579 = vmul.f32 %v470, %v523
    %v580 = vmul.f32 %v475, %v523
    %v581 = vmul.f32 %v480, %v523
    %v582 = vmul.f32 %v485, %v523
    %v583 = vmul.f32 %v490, %v523
    %v584 = vmul.f32 %v495, %v523
    %v585 = vmul.f32 %v500, %v523
    %v586 = vmul.f32 %v505, %v523
    %v587 = vmul.f32 %v510, %v523
    %v588 = vmul.f32 %v515, %v523
    %589 = vst [vmem:[#allocation7] sm:$0xff] %v525
    %590 = vst [vmem:[#allocation7 + $0x8] sm:$0xff] %v526
    %591 = vst [vmem:[#allocation7 + $0x10] sm:$0xff] %v527
    %592 = vst [vmem:[#allocation7 + $0x18] sm:$0xff] %v528
    %593 = vst [vmem:[#allocation7 + $0x20] sm:$0xff] %v529
    %594 = vst [vmem:[#allocation7 + $0x28] sm:$0xff] %v530
    %595 = vst [vmem:[#allocation7 + $0x30] sm:$0xff] %v531
    %596 = vst [vmem:[#allocation7 + $0x38] sm:$0xff] %v532
    %597 = vst [vmem:[#allocation7 + $0x40] sm:$0xff] %v533
    %598 = vst [vmem:[#allocation7 + $0x48] sm:$0xff] %v534
    %599 = vst [vmem:[#allocation7 + $0x50] sm:$0xff] %v535
    %600 = vst [vmem:[#allocation7 + $0x58] sm:$0xff] %v536
    %601 = vst [vmem:[#allocation7 + $0x60] sm:$0xff] %v537
    %602 = vst [vmem:[#allocation7 + $0x68] sm:$0xff] %v538
    %603 = vst [vmem:[#allocation7 + $0x70] sm:$0xff] %v539
    %604 = vst [vmem:[#allocation7 + $0x78] sm:$0xff] %v540
    %605 = vst [vmem:[#allocation7 + $0x80] sm:$0xff] %v541
    %606 = vst [vmem:[#allocation7 + $0x88] sm:$0xff] %v542
    %607 = vst [vmem:[#allocation7 + $0x90] sm:$0xff] %v543
    %608 = vst [vmem:[#allocation7 + $0x98] sm:$0xff] %v544
    %609 = vst [vmem:[#allocation7 + $0xa0] sm:$0xff] %v545
    %610 = vst [vmem:[#allocation7 + $0xa8] sm:$0xff] %v546
    %611 = vst [vmem:[#allocation7 + $0xb0] sm:$0xff] %v547
    %612 = vst [vmem:[#allocation7 + $0xb8] sm:$0xff] %v548
    %613 = vst [vmem:[#allocation7 + $0xc0] sm:$0xff] %v549
    %614 = vst [vmem:[#allocation7 + $0xc8] sm:$0xff] %v550
    %615 = vst [vmem:[#allocation7 + $0xd0] sm:$0xff] %v551
    %616 = vst [vmem:[#allocation7 + $0xd8] sm:$0xff] %v552
    %617 = vst [vmem:[#allocation7 + $0xe0] sm:$0xff] %v553
    %618 = vst [vmem:[#allocation7 + $0xe8] sm:$0xff] %v554
    %619 = vst [vmem:[#allocation7 + $0xf0] sm:$0xff] %v555
    %620 = vst [vmem:[#allocation7 + $0xf8] sm:$0xff] %v556
    %621 = vst [vmem:[#allocation7 + $0x100] sm:$0xff] %v557
    %622 = vst [vmem:[#allocation7 + $0x108] sm:$0xff] %v558
    %623 = vst [vmem:[#allocation7 + $0x110] sm:$0xff] %v559
    %624 = vst [vmem:[#allocation7 + $0x118] sm:$0xff] %v560
    %625 = vst [vmem:[#allocation7 + $0x120] sm:$0xff] %v561
    %626 = vst [vmem:[#allocation7 + $0x128] sm:$0xff] %v562
    %627 = vst [vmem:[#allocation7 + $0x130] sm:$0xff] %v563
    %628 = vst [vmem:[#allocation7 + $0x138] sm:$0xff] %v564
    %629 = vst [vmem:[#allocation7 + $0x140] sm:$0xff] %v565
    %630 = vst [vmem:[#allocation7 + $0x148] sm:$0xff] %v566
    %631 = vst [vmem:[#allocation7 + $0x150] sm:$0xff] %v567
    %632 = vst [vmem:[#allocation7 + $0x158] sm:$0xff] %v568
    %633 = vst [vmem:[#allocation7 + $0x160] sm:$0xff] %v569
    %634 = vst [vmem:[#allocation7 + $0x168] sm:$0xff] %v570
    %635 = vst [vmem:[#allocation7 + $0x170] sm:$0xff] %v571
    %636 = vst [vmem:[#allocation7 + $0x178] sm:$0xff] %v572
    %637 = vst [vmem:[#allocation7 + $0x180] sm:$0xff] %v573
    %638 = vst [vmem:[#allocation7 + $0x188] sm:$0xff] %v574
    %639 = vst [vmem:[#allocation7 + $0x190] sm:$0xff] %v575
    %640 = vst [vmem:[#allocation7 + $0x198] sm:$0xff] %v576
    %641 = vst [vmem:[#allocation7 + $0x1a0] sm:$0xff] %v577
    %642 = vst [vmem:[#allocation7 + $0x1a8] sm:$0xff] %v578
    %643 = vst [vmem:[#allocation7 + $0x1b0] sm:$0xff] %v579
    %644 = vst [vmem:[#allocation7 + $0x1b8] sm:$0xff] %v580
    %645 = vst [vmem:[#allocation7 + $0x1c0] sm:$0xff] %v581
    %646 = vst [vmem:[#allocation7 + $0x1c8] sm:$0xff] %v582
    %647 = vst [vmem:[#allocation7 + $0x1d0] sm:$0xff] %v583
    %648 = vst [vmem:[#allocation7 + $0x1d8] sm:$0xff] %v584
    %649 = vst [vmem:[#allocation7 + $0x1e0] sm:$0xff] %v585
    %650 = vst [vmem:[#allocation7 + $0x1e8] sm:$0xff] %v586
    %651 = vst [vmem:[#allocation7 + $0x1f0] sm:$0xff] %v587
    %652 = vst [vmem:[#allocation7 + $0x1f8] sm:$0xff] %v588
    // Predicated region
    $region26: #{tpu_custom_call.1} parent=1 // pred_check
      _
    $region27: #{tpu_custom_call.1} parent=1 // pred_check_branch
      %654 = sbr.rel (0) target = $region29
    $region28: #{tpu_custom_call.1} parent=1 // pred_region
      %s656 = ssub.s32 8192, 8192
      %657 = vsyncadd [#allocation4], %s656
      %s658 = sshll.u32 [#allocation7], 4
      %s659 = int_to_ptr.vmem [resolvable:$true] %s658
      %664 = dma.vmem_to_hbm [thread:$0]  %s659, 8192, %s4, [#allocation4], 128, 128, 8
    $region29: #{tpu_custom_call.1} parent=1 // pred_fallthru
      _
    // Predicated region
    $region30: #{tpu_custom_call.1} parent=1 // pred_check
      _
    $region31: #{tpu_custom_call.1} parent=1 // pred_check_branch
      %666 = sbr.rel (0) target = $region33
    $region32: #{tpu_custom_call.1} parent=1 // pred_region
      %667 = dma.done [#allocation4], 8192
    $region33: #{tpu_custom_call.1} parent=1 // pred_fallthru
      _
    %668 = vsyncpa [#allocation3], 1
    %669 = vsyncpa [#allocation6], 1
    %670 = vsyncpa [#allocation4], 1

</llo_original>
